<compile_context>
chip_gen: v7x
topology: tpu7x:2x2x1
jax: 0.10.0
libtpu: 0.0.40
codegen_flags: <defaults>
</compile_context>

<pallas_src>
from functools import partial

import jax
import jax.numpy as jnp
import numpy as np
from jax import lax
from jax.experimental import pallas as pl
from jax.experimental.pallas import tpu as pltpu

EPS = 1e-5
LANE = 128
MAX_BAND_ROWS = 4096                      # rows per grid step (lane dim is <=128)
FUSED_Y_LIMIT_BYTES = 8 * 1024 * 1024     # keep whole conv output in VMEM below this


def _round_up(a, b):
    return -(-a // b) * b


def _vmem_limit_bytes():
    # v5e/v6e: 128 MiB physical VMEM; v7x: 64 MiB per TensorCore.  Ask for half
    # the physical capacity (capped at 64 MiB) with a conservative fallback.
    try:
        cap = int(pltpu.get_tpu_info().vmem_capacity_bytes)
        return int(min(cap // 2, 64 * 1024 * 1024))
    except Exception:
        return 32 * 1024 * 1024


# ---------------- Fused fast path: conv GEMM + BN stats + BN/ReLU in VMEM ------
def fused_conv_bn_relu_kernel(p_ref, w_ref, gb_ref, r_ref, o_ref,
                              y_sc, stats_sc, sb_sc, *, count, eps):
    # grid = (2, num_bands): phase 0 = GEMM + stats, phase 1 = BN + ReLU.
    # p_ref : (TM, FOLD*KP)   folded im2col patches (band)
    # w_ref : (FOLD*KP, L)    block-diagonal folded conv weight
    # gb_ref: (2, L)          [gamma; beta] tiled across fold groups
    # r_ref : (L, L)          kron(ones(fold,fold), I_Cout) fold-group reducer
    # o_ref : (TM, L)         output band (written in phase 1 only)
    # y_sc  : (num_bands, TM, L) f32  VMEM-resident conv output
    # stats_sc: (8, L) f32    rows 0/1 = running [sum, sum_of_squares]
    # sb_sc : (2, L) f32      [scale; bias]
    phase = pl.program_id(0)
    band = pl.program_id(1)

    @pl.when(phase == 0)
    def _():
        @pl.when(band == 0)
        def _():
            stats_sc[...] = jnp.zeros_like(stats_sc)

        y = jnp.dot(p_ref[...], w_ref[...], preferred_element_type=jnp.float32)
        y_sc[band] = y
        stats_sc[0:1, :] = stats_sc[0:1, :] + jnp.sum(y, axis=0, keepdims=True)
        stats_sc[1:2, :] = stats_sc[1:2, :] + jnp.sum(y * y, axis=0, keepdims=True)

    @pl.when(phase == 1)
    def _():
        @pl.when(band == 0)
        def _():
            # Sum the fold lane groups per channel (replicated back across the
            # groups) with one tiny MXU matmul; then scale/bias via EUP rsqrt.
            tot = jnp.dot(stats_sc[...], r_ref[...],
                          preferred_element_type=jnp.float32)      # (8, L)
            inv = 1.0 / count
            mean = tot[0:1, :] * inv
            var = jnp.maximum(tot[1:2, :] * inv - mean * mean, 0.0)
            scale = gb_ref[0:1, :] * lax.rsqrt(var + eps)
            sb_sc[0:1, :] = scale
            sb_sc[1:2, :] = gb_ref[1:2, :] - mean * scale

        # 2 VPU ops / element, straight from VMEM scratch -> HBM output.
        o_ref[...] = jnp.maximum(y_sc[band] * sb_sc[0:1, :] + sb_sc[1:2, :], 0.0)


# ---------------- Banded path, kernel 1: conv GEMM + partial BN stats ----------
def conv_stats_kernel(p_ref, w_ref, y_ref, stats_ref):
    # y_ref     : (TM, L)     conv output band (bf16 when MXU feed is bf16)
    # stats_ref : (1, 2, L)   per-band partial [sum, sum_of_squares] (f32)
    y = jnp.dot(p_ref[...], w_ref[...], preferred_element_type=jnp.float32)
    y_ref[...] = y.astype(y_ref.dtype)
    stats_ref[0, 0:1, :] = jnp.sum(y, axis=0, keepdims=True)
    stats_ref[0, 1:2, :] = jnp.sum(y * y, axis=0, keepdims=True)


# ---------------- Banded path, kernel 2: pure scale/bias + ReLU stream ---------
def bn_relu_kernel(scale_ref, bias_ref, y_ref, o_ref):
    o_ref[...] = jnp.maximum(
        y_ref[...].astype(jnp.float32) * scale_ref[...] + bias_ref[...], 0.0)


# ---------------- Wrapper ------------------------------------------------------
@partial(jax.jit, static_argnames=("pool", "mxu_dtype", "force_two_pass"))
def cnn_block_forward(x_nchw, w_oihw, gamma, beta, *,
                      pool=False, mxu_dtype=jnp.bfloat16, force_two_pass=False):
    """Forward pass of CNNBlock (conv=True). x_nchw: (N, Cin, H, W) float32."""
    N, Cin, H, W = x_nchw.shape
    Cout, _, KH, KW = w_oihw.shape
    pad = 1  # module defaults -> 3x3, stride 1, padding 1

    # Lane folding factor: how many spatial positions share one 128-lane row.
    if Cout <= LANE and LANE % Cout == 0:
        fold = LANE // Cout
        while fold > 1 and (H * W) % fold:
            fold //= 2
    else:
        fold = 1
    L = fold * Cout
    count = float(N * H * W)

    # ---- glue: NCHW->NHWC, cast to MXU dtype BEFORE im2col, fold lanes ------
    x_nhwc = jnp.transpose(x_nchw, (0, 2, 3, 1)).astype(mxu_dtype)
    xp = jnp.pad(x_nhwc, ((0, 0), (pad, pad), (pad, pad), (0, 0)))
    taps = [xp[:, kh:kh + H, kw:kw + W, :] for kh in range(KH) for kw in range(KW)]
    patches = jnp.concatenate(taps, axis=-1)          # (N, H, W, KH*KW*Cin)
    kk = KH * KW * Cin
    kp = _round_up(kk, 8)                             # pad K (27 -> 32)
    patches = jnp.pad(patches, ((0, 0), (0, 0), (0, 0), (0, kp - kk)))
    M = (N * H * W) // fold                           # folded rows
    patches = patches.reshape(M, fold * kp)

    # ---- band sizing ---------------------------------------------------------
    use_fused = (not force_two_pass) and (_round_up(M, 8) * L * 4 <= FUSED_Y_LIMIT_BYTES)
    if use_fused:
        tm = min(_round_up(M, 8), MAX_BAND_ROWS)
    else:
        # At least two (even count) bands so the "parallel" band axis can split
        # across both TensorCores on v7x.
        nb = max(2, -(-M // MAX_BAND_ROWS))
        nb += nb % 2
        tm = _round_up(-(-M // nb), 8)
    m_pad = _round_up(M, tm)
    num_bands = m_pad // tm
    if m_pad != M:                                    # zero rows: no effect on stats
        patches = jnp.pad(patches, ((0, m_pad - M), (0, 0)))

    # Folded block-diagonal GEMM weight: kron(I_fold, W[kk->kp, Cout]).
    w_mat = jnp.transpose(w_oihw, (2, 3, 1, 0)).reshape(kk, Cout).astype(jnp.float32)
    w_mat = jnp.pad(w_mat, ((0, kp - kk), (0, 0)))
    w_fold = jnp.kron(jnp.eye(fold, dtype=jnp.float32), w_mat).astype(mxu_dtype)

    # Per-channel affine tiled across the fold groups -> lane-dense rows.
    gamma_t = jnp.tile(gamma.reshape(1, Cout).astype(jnp.float32), (1, fold))
    beta_t = jnp.tile(beta.reshape(1, Cout).astype(jnp.float32), (1, fold))

    vmem_limit = _vmem_limit_bytes()

    if use_fused:
        # -------- single pallas_call, conv output never leaves VMEM ----------
        gb = jnp.concatenate([gamma_t, beta_t], axis=0)                 # (2, L)
        r_fold = jnp.kron(jnp.ones((fold, fold), jnp.float32),
                          jnp.eye(Cout, dtype=jnp.float32))             # (L, L)
        out_rows = pl.pallas_call(
            partial(fused_conv_bn_relu_kernel, count=count, eps=EPS),
            out_shape=jax.ShapeDtypeStruct((m_pad, L), jnp.float32),
            grid=(2, num_bands),
            in_specs=[
                pl.BlockSpec((tm, fold * kp), lambda p, b: (b * (1 - p), 0)),
                pl.BlockSpec((fold * kp, L), lambda p, b: (0, 0)),
                pl.BlockSpec((2, L), lambda p, b: (0, 0)),
                pl.BlockSpec((L, L), lambda p, b: (0, 0)),
            ],
            out_specs=pl.BlockSpec((tm, L), lambda p, b: (b * p, 0)),
            scratch_shapes=[
                pltpu.VMEM((num_bands, tm, L), jnp.float32),   # resident conv out
                pltpu.VMEM((8, L), jnp.float32),               # running [sum,sumsq]
                pltpu.VMEM((2, L), jnp.float32),               # [scale, bias]
            ],
            compiler_params=pltpu.CompilerParams(
                dimension_semantics=("arbitrary", "arbitrary"),
                vmem_limit_bytes=vmem_limit),
        )(patches, w_fold, gb, r_fold)
    else:
        # -------- banded two-pass path (large activations) --------------------
        y_dtype = jnp.float32 if mxu_dtype == jnp.float32 else jnp.bfloat16
        cparams = pltpu.CompilerParams(
            dimension_semantics=("parallel",), vmem_limit_bytes=vmem_limit)

        y, stats = pl.pallas_call(
            conv_stats_kernel,
            out_shape=(jax.ShapeDtypeStruct((m_pad, L), y_dtype),
                       jax.ShapeDtypeStruct((num_bands, 2, L), jnp.float32)),
            grid=(num_bands,),
            in_specs=[
                pl.BlockSpec((tm, fold * kp), lambda b: (b, 0)),
                pl.BlockSpec((fold * kp, L), lambda b: (0, 0)),
            ],
            out_specs=(
                pl.BlockSpec((tm, L), lambda b: (b, 0)),
                pl.BlockSpec((1, 2, L), lambda b: (b, 0, 0)),
            ),
            compiler_params=cparams,
        )(patches, w_fold)

        # Tiny XLA reduction: per-band partials -> per-channel scale/bias.
        tot = stats.sum(axis=0).reshape(2, fold, Cout).sum(axis=1)      # (2, Cout)
        mean = tot[0] / count
        var = jnp.maximum(tot[1] / count - mean * mean, 0.0)
        scale_c = gamma.astype(jnp.float32) * lax.rsqrt(var + EPS)
        bias_c = beta.astype(jnp.float32) - mean * scale_c
        scale = jnp.tile(scale_c.reshape(1, Cout), (1, fold))           # (1, L)
        bias = jnp.tile(bias_c.reshape(1, Cout), (1, fold))

        out_rows = pl.pallas_call(
            bn_relu_kernel,
            out_shape=jax.ShapeDtypeStruct((m_pad, L), jnp.float32),
            grid=(num_bands,),
            in_specs=[
                pl.BlockSpec((1, L), lambda b: (0, 0)),
                pl.BlockSpec((1, L), lambda b: (0, 0)),
                pl.BlockSpec((tm, L), lambda b: (b, 0)),
            ],
            out_specs=pl.BlockSpec((tm, L), lambda b: (b, 0)),
            compiler_params=cparams,
        )(scale, bias, y)

    # ---- glue: unfold lanes back to (N, H, W, Cout), optional pool, to NCHW -
    out_nhwc = out_rows[:M].reshape(N, H, W, Cout)
    if pool:
        # TODO(synk): pool=True (MaxPool2d 2x2) is done as XLA reshape/max glue,
        # not a Pallas kernel; the module default (pool=False -> Identity) is
        # the exercised path.
        out_nhwc = out_nhwc.reshape(N, H // 2, 2, W // 2, 2, Cout).max(axis=(2, 4))
    # NOTE: the trailing NHWC->NCHW transpose is XLA glue (one extra read+write
    # of the output); return NHWC directly if the consumer allows.
    return jnp.transpose(out_nhwc, (0, 3, 1, 2))


# ---------------- Pure-JAX reference -------------------------------------------
def reference_forward(x, w, gamma, beta, *, pool=False):
    """Matches PyTorch CNNBlock forward (training-mode BatchNorm)."""
    y = lax.conv_general_dilated(
        x, w, window_strides=(1, 1), padding=((1, 1), (1, 1)),
        dimension_numbers=("NCHW", "OIHW", "NCHW"),
        precision=lax.Precision.HIGHEST)
    mean = y.mean(axis=(0, 2, 3), keepdims=True)
    var = y.var(axis=(0, 2, 3), keepdims=True)       # biased variance
    y = (y - mean) / jnp.sqrt(var + EPS)
    y = y * gamma.reshape(1, -1, 1, 1) + beta.reshape(1, -1, 1, 1)
    y = jnp.maximum(y, 0.0)
    if pool:
        y = lax.reduce_window(y, -jnp.inf, lax.max,
                              (1, 1, 2, 2), (1, 1, 2, 2), "VALID")
    return y


if __name__ == "__main__":
    # Module defaults: in_channels=3, out_channels=32, 3x3, stride=1, padding=1,
    # bias=False, pool=False (Identity), conv=True.
    N, Cin, H, W = 2, 3, 16, 16
    Cout, KH, KW = 32, 3, 3

    key = jax.random.PRNGKey(0)
    kx, kw = jax.random.split(key)
    x = jax.random.normal(kx, (N, Cin, H, W), dtype=jnp.float32)
    bound = 1.0 / np.sqrt(Cin * KH * KW)
    w = jax.random.uniform(kw, (Cout, Cin, KH, KW), dtype=jnp.float32,
                           minval=-bound, maxval=bound)
    gamma = jnp.ones((Cout,), jnp.float32)            # BatchNorm2d init
    beta = jnp.zeros((Cout,), jnp.float32)

    ref_f32 = reference_forward(x, w, gamma, beta)
    x_r = x.astype(jnp.bfloat16).astype(jnp.float32)
    w_r = w.astype(jnp.bfloat16).astype(jnp.float32)
    ref_bf16 = reference_forward(x_r, w_r, gamma, beta)

    # 1) fused VMEM-resident path, f32-fed GEMM (strict tolerance).
    out = jax.block_until_ready(
        cnn_block_forward(x, w, gamma, beta, mxu_dtype=jnp.float32))
    assert out.shape == (N, Cout, H, W)
    np.testing.assert_allclose(np.asarray(out), np.asarray(ref_f32),
                               rtol=2e-3, atol=2e-3)

    # 2) fused path, bf16-fed GEMM (f32 accumulation) vs bf16-rounded reference.
    out = jax.block_until_ready(
        cnn_block_forward(x, w, gamma, beta, mxu_dtype=jnp.bfloat16))
    np.testing.assert_allclose(np.asarray(out), np.asarray(ref_bf16),
                               rtol=5e-3, atol=5e-3)

    # 3) banded two-pass path, f32 everywhere (exercises partial-stats reduce).
    out = jax.block_until_ready(
        cnn_block_forward(x, w, gamma, beta, mxu_dtype=jnp.float32,
                          force_two_pass=True))
    np.testing.assert_allclose(np.asarray(out), np.asarray(ref_f32),
                               rtol=2e-3, atol=2e-3)

    # 4) banded path, bf16-fed GEMM with bf16 conv-output round trip.
    out = jax.block_until_ready(
        cnn_block_forward(x, w, gamma, beta, mxu_dtype=jnp.bfloat16,
                          force_two_pass=True))
    np.testing.assert_allclose(np.asarray(out), np.asarray(ref_bf16),
                               rtol=3e-2, atol=3e-2)

    print("KERNEL_OK")
</pallas_src>

<mosaic_0001>
module attributes {stable_mosaic.version = 11 : i64} {
  func.func @fused_conv_bn_relu_kernel(%arg0: i32, %arg1: i32, %arg2: memref<128x128xf32, #tpu.memory_space<vmem>>, %arg3: memref<128x128xf32, #tpu.memory_space<vmem>>, %arg4: memref<2x128xf32, #tpu.memory_space<vmem>>, %arg5: memref<128x128xf32, #tpu.memory_space<vmem>>, %arg6: memref<128x128xf32, #tpu.memory_space<vmem>>, %arg7: memref<1x128x128xf32, #tpu.memory_space<vmem>>, %arg8: memref<8x128xf32, #tpu.memory_space<vmem>>, %arg9: memref<2x128xf32, #tpu.memory_space<vmem>>) attributes {dimension_semantics = [#tpu.dimension_semantics<arbitrary>, #tpu.dimension_semantics<arbitrary>], iteration_bounds = array<i64: 2, 1>, scalar_prefetch = 0 : i64, scratch_operands = 3 : i64, tpu.core_type = #tpu.core_type<tc>, window_params = [{transform_indices = @transform_0, window_bounds = array<i64: 128, 128>}, {pipeline_mode = #tpu.pipeline_mode<synchronous>, transform_indices = @transform_1, window_bounds = array<i64: 128, 128>}, {pipeline_mode = #tpu.pipeline_mode<synchronous>, transform_indices = @transform_2, window_bounds = array<i64: 2, 128>}, {pipeline_mode = #tpu.pipeline_mode<synchronous>, transform_indices = @transform_3, window_bounds = array<i64: 128, 128>}, {transform_indices = @transform_4, window_bounds = array<i64: 128, 128>}]} {
    %c0_i32 = arith.constant 0 : i32
    %0 = arith.cmpi eq, %arg0, %c0_i32 : i32
    %1 = arith.extui %0 : i1 to i32
    %c0_i32_0 = arith.constant 0 : i32
    %2 = arith.cmpi ne, %1, %c0_i32_0 : i32
    scf.if %2 {
      %c0_i32_2 = arith.constant 0 : i32
      %6 = arith.cmpi eq, %arg1, %c0_i32_2 : i32
      %7 = arith.extui %6 : i1 to i32
      %c0_i32_3 = arith.constant 0 : i32
      %8 = arith.cmpi ne, %7, %c0_i32_3 : i32
      scf.if %8 {
        %cst_18 = arith.constant 0.000000e+00 : f32
        %27 = vector.broadcast %cst_18 : f32 to vector<8x128xf32>
        %c0_19 = arith.constant 0 : index
        %c0_20 = arith.constant 0 : index
        %28 = vector.load %arg8[%c0_19, %c0_20] : memref<8x128xf32, #tpu.memory_space<vmem>>, vector<8x128xf32>
        tpu.vector_store %arg8[%c0_19, %c0_20], %27 {strides = array<i32>} : memref<8x128xf32, #tpu.memory_space<vmem>>, vector<8x128xf32>,
      } else {
      }
      %c0 = arith.constant 0 : index
      %c0_4 = arith.constant 0 : index
      %9 = vector.load %arg2[%c0, %c0_4] : memref<128x128xf32, #tpu.memory_space<vmem>>, vector<128x128xf32>
      %c0_5 = arith.constant 0 : index
      %c0_6 = arith.constant 0 : index
      %10 = vector.load %arg3[%c0_5, %c0_6] : memref<128x128xf32, #tpu.memory_space<vmem>>, vector<128x128xf32>
      %cst = arith.constant dense<0.000000e+00> : vector<128x128xf32>
      %11 = tpu.matmul %9, %10, %cst {dimension_numbers = #tpu.dot_dimension_numbers<[1], [0], [0], [1], [0, 0, 1, 1], [], []>} : vector<128x128xf32>, vector<128x128xf32>, vector<128x128xf32> -> vector<128x128xf32>
      %12 = arith.index_cast %arg1 : i32 to index
      %c0_7 = arith.constant 0 : index
      %c0_8 = arith.constant 0 : index
      %13 = vector.load %arg7[%12, %c0_7, %c0_8] : memref<1x128x128xf32, #tpu.memory_space<vmem>>, vector<1x128x128xf32>
      %14 = vector.shape_cast %13 : vector<1x128x128xf32> to vector<128x128xf32>
      %15 = vector.shape_cast %11 : vector<128x128xf32> to vector<1x128x128xf32>
      tpu.vector_store %arg7[%12, %c0_7, %c0_8], %15 {strides = array<i32>} : memref<1x128x128xf32, #tpu.memory_space<vmem>>, vector<1x128x128xf32>,
      %c0_9 = arith.constant 0 : index
      %c0_10 = arith.constant 0 : index
      %16 = vector.load %arg8[%c0_9, %c0_10] : memref<8x128xf32, #tpu.memory_space<vmem>>, vector<1x128xf32>
      %cst_11 = arith.constant dense<0.000000e+00> : vector<128xf32>
      %17 = vector.multi_reduction <add>, %11, %cst_11 [0] : vector<128x128xf32> to vector<128xf32>
      %18 = vector.shape_cast %17 : vector<128xf32> to vector<1x128xf32>
      %19 = arith.addf %16, %18 : vector<1x128xf32>
      %c0_12 = arith.constant 0 : index
      %c0_13 = arith.constant 0 : index
      %20 = vector.load %arg8[%c0_12, %c0_13] : memref<8x128xf32, #tpu.memory_space<vmem>>, vector<1x128xf32>
      tpu.vector_store %arg8[%c0_12, %c0_13], %19 {strides = array<i32>} : memref<8x128xf32, #tpu.memory_space<vmem>>, vector<1x128xf32>,
      %c1 = arith.constant 1 : index
      %c0_14 = arith.constant 0 : index
      %21 = vector.load %arg8[%c1, %c0_14] : memref<8x128xf32, #tpu.memory_space<vmem>>, vector<1x128xf32>
      %22 = arith.mulf %11, %11 : vector<128x128xf32>
      %cst_15 = arith.constant dense<0.000000e+00> : vector<128xf32>
      %23 = vector.multi_reduction <add>, %22, %cst_15 [0] : vector<128x128xf32> to vector<128xf32>
      %24 = vector.shape_cast %23 : vector<128xf32> to vector<1x128xf32>
      %25 = arith.addf %21, %24 : vector<1x128xf32>
      %c1_16 = arith.constant 1 : index
      %c0_17 = arith.constant 0 : index
      %26 = vector.load %arg8[%c1_16, %c0_17] : memref<8x128xf32, #tpu.memory_space<vmem>>, vector<1x128xf32>
      tpu.vector_store %arg8[%c1_16, %c0_17], %25 {strides = array<i32>} : memref<8x128xf32, #tpu.memory_space<vmem>>, vector<1x128xf32>,
    } else {
    }
    %c1_i32 = arith.constant 1 : i32
    %3 = arith.cmpi eq, %arg0, %c1_i32 : i32
    %4 = arith.extui %3 : i1 to i32
    %c0_i32_1 = arith.constant 0 : i32
    %5 = arith.cmpi ne, %4, %c0_i32_1 : i32
    scf.if %5 {
      %c0_i32_2 = arith.constant 0 : i32
      %6 = arith.cmpi eq, %arg1, %c0_i32_2 : i32
      %7 = arith.extui %6 : i1 to i32
      %c0_i32_3 = arith.constant 0 : i32
      %8 = arith.cmpi ne, %7, %c0_i32_3 : i32
      scf.if %8 {
        %c0_10 = arith.constant 0 : index
        %c0_11 = arith.constant 0 : index
        %21 = vector.load %arg8[%c0_10, %c0_11] : memref<8x128xf32, #tpu.memory_space<vmem>>, vector<8x128xf32>
        %c0_12 = arith.constant 0 : index
        %c0_13 = arith.constant 0 : index
        %22 = vector.load %arg5[%c0_12, %c0_13] : memref<128x128xf32, #tpu.memory_space<vmem>>, vector<128x128xf32>
        %cst_14 = arith.constant dense<0.000000e+00> : vector<8x128xf32>
        %23 = tpu.matmul %21, %22, %cst_14 {dimension_numbers = #tpu.dot_dimension_numbers<[1], [0], [0], [1], [0, 0, 1, 1], [], []>} : vector<8x128xf32>, vector<128x128xf32>, vector<8x128xf32> -> vector<8x128xf32>
        %24 = vector.extract_strided_slice %23 {offsets = [0, 0], sizes = [1, 128], strides = [1, 1]} : vector<8x128xf32> to vector<1x128xf32>
        %cst_15 = arith.constant 0.001953125 : f32
        %25 = vector.broadcast %cst_15 : f32 to vector<1x128xf32>
        %26 = arith.mulf %24, %25 : vector<1x128xf32>
        %27 = vector.extract_strided_slice %23 {offsets = [1, 0], sizes = [1, 128], strides = [1, 1]} : vector<8x128xf32> to vector<1x128xf32>
        %cst_16 = arith.constant 0.001953125 : f32
        %28 = vector.broadcast %cst_16 : f32 to vector<1x128xf32>
        %29 = arith.mulf %27, %28 : vector<1x128xf32>
        %30 = arith.mulf %26, %26 : vector<1x128xf32>
        %31 = arith.subf %29, %30 : vector<1x128xf32>
        %cst_17 = arith.constant 0.000000e+00 : f32
        %32 = vector.broadcast %cst_17 : f32 to vector<1x128xf32>
        %33 = arith.maximumf %31, %32 : vector<1x128xf32>
        %c0_18 = arith.constant 0 : index
        %c0_19 = arith.constant 0 : index
        %34 = vector.load %arg4[%c0_18, %c0_19] : memref<2x128xf32, #tpu.memory_space<vmem>>, vector<1x128xf32>
        %cst_20 = arith.constant 9.99999974E-6 : f32
        %35 = vector.broadcast %cst_20 : f32 to vector<1x128xf32>
        %36 = arith.addf %33, %35 : vector<1x128xf32>
        %37 = math.rsqrt %36 : vector<1x128xf32>
        %38 = arith.mulf %34, %37 : vector<1x128xf32>
        %c0_21 = arith.constant 0 : index
        %c0_22 = arith.constant 0 : index
        %39 = vector.load %arg9[%c0_21, %c0_22] : memref<2x128xf32, #tpu.memory_space<vmem>>, vector<1x128xf32>
        tpu.vector_store %arg9[%c0_21, %c0_22], %38 {strides = array<i32>} : memref<2x128xf32, #tpu.memory_space<vmem>>, vector<1x128xf32>,
        %c1_23 = arith.constant 1 : index
        %c0_24 = arith.constant 0 : index
        %40 = vector.load %arg4[%c1_23, %c0_24] : memref<2x128xf32, #tpu.memory_space<vmem>>, vector<1x128xf32>
        %41 = arith.mulf %26, %38 : vector<1x128xf32>
        %42 = arith.subf %40, %41 : vector<1x128xf32>
        %c1_25 = arith.constant 1 : index
        %c0_26 = arith.constant 0 : index
        %43 = vector.load %arg9[%c1_25, %c0_26] : memref<2x128xf32, #tpu.memory_space<vmem>>, vector<1x128xf32>
        tpu.vector_store %arg9[%c1_25, %c0_26], %42 {strides = array<i32>} : memref<2x128xf32, #tpu.memory_space<vmem>>, vector<1x128xf32>,
      } else {
      }
      %9 = arith.index_cast %arg1 : i32 to index
      %c0 = arith.constant 0 : index
      %c0_4 = arith.constant 0 : index
      %10 = vector.load %arg7[%9, %c0, %c0_4] : memref<1x128x128xf32, #tpu.memory_space<vmem>>, vector<1x128x128xf32>
      %11 = vector.shape_cast %10 : vector<1x128x128xf32> to vector<128x128xf32>
      %c0_5 = arith.constant 0 : index
      %c0_6 = arith.constant 0 : index
      %12 = vector.load %arg9[%c0_5, %c0_6] : memref<2x128xf32, #tpu.memory_space<vmem>>, vector<1x128xf32>
      %13 = vector.broadcast %12 : vector<1x128xf32> to vector<128x128xf32>
      %14 = arith.mulf %11, %13 : vector<128x128xf32>
      %c1 = arith.constant 1 : index
      %c0_7 = arith.constant 0 : index
      %15 = vector.load %arg9[%c1, %c0_7] : memref<2x128xf32, #tpu.memory_space<vmem>>, vector<1x128xf32>
      %16 = vector.broadcast %15 : vector<1x128xf32> to vector<128x128xf32>
      %17 = arith.addf %14, %16 : vector<128x128xf32>
      %cst = arith.constant 0.000000e+00 : f32
      %18 = vector.broadcast %cst : f32 to vector<128x128xf32>
      %19 = arith.maximumf %17, %18 : vector<128x128xf32>
      %c0_8 = arith.constant 0 : index
      %c0_9 = arith.constant 0 : index
      %20 = vector.load %arg6[%c0_8, %c0_9] : memref<128x128xf32, #tpu.memory_space<vmem>>, vector<128x128xf32>
      tpu.vector_store %arg6[%c0_8, %c0_9], %19 {strides = array<i32>} : memref<128x128xf32, #tpu.memory_space<vmem>>, vector<128x128xf32>,
    } else {
    }
    return
  }
  func.func @transform_0(%arg0: i32, %arg1: i32) -> (i32, i32) {
    %c1_i32 = arith.constant 1 : i32
    %0 = arith.subi %c1_i32, %arg0 : i32
    %1 = arith.muli %arg1, %0 : i32
    %c0_i32 = arith.constant 0 : i32
    %c0_i32_0 = arith.constant 0 : i32
    return %1, %c0_i32 : i32, i32
  }
  func.func @transform_1(%arg0: i32, %arg1: i32) -> (i32, i32) {
    %c0_i32 = arith.constant 0 : i32
    %c0_i32_0 = arith.constant 0 : i32
    %c0_i32_1 = arith.constant 0 : i32
    return %c0_i32, %c0_i32_0 : i32, i32
  }
  func.func @transform_2(%arg0: i32, %arg1: i32) -> (i32, i32) {
    %c0_i32 = arith.constant 0 : i32
    %c0_i32_0 = arith.constant 0 : i32
    %c0_i32_1 = arith.constant 0 : i32
    return %c0_i32, %c0_i32_0 : i32, i32
  }
  func.func @transform_3(%arg0: i32, %arg1: i32) -> (i32, i32) {
    %c0_i32 = arith.constant 0 : i32
    %c0_i32_0 = arith.constant 0 : i32
    %c0_i32_1 = arith.constant 0 : i32
    return %c0_i32, %c0_i32_0 : i32, i32
  }
  func.func @transform_4(%arg0: i32, %arg1: i32) -> (i32, i32) {
    %0 = arith.muli %arg1, %arg0 : i32
    %c0_i32 = arith.constant 0 : i32
    %c0_i32_0 = arith.constant 0 : i32
    return %0, %c0_i32 : i32, i32
  }
}

</mosaic_0001>

<llo_original>
// kernel: cnn_block_forward.1
$region0: #{cnn_block_forward.1}
  #allocation0 [shape = 'u32[]', space=smem, size = 0x4, offset = 0x4, fixed_abs, tag = 'smem constant byte address 0x4 - core index']
  #allocation1 [shape = 'u32[144,128]{1,0:T(1,128)}', space=vmem, size = 0x12000, scoped, tag = 'internal scratch']
  #allocation2 [shape = 'f32[1,128,128]{2,1,0:T(8,128)}', space=vmem, size = 0x10000, scoped, tag = 'scratch operand']
  #allocation3 [shape = 'f32[8,128]{1,0:T(8,128)}', space=vmem, size = 0x1000, scoped, tag = 'scratch operand']
  #allocation4 [shape = 'f32[2,128]{1,0:T(2,128)}', space=vmem, size = 0x400, scoped, tag = 'scratch operand']
  %s0 = inlined_call_operand.vmem [shape: f32[128,128], index: 0, kind: input, shape index: {}]
  %s1 = inlined_call_operand.vmem [shape: f32[128,128], index: 1, kind: input, shape index: {}]
  %s2 = inlined_call_operand.vmem [shape: f32[2,128], index: 2, kind: input, shape index: {}]
  %s3 = inlined_call_operand.vmem [shape: f32[128,128], index: 3, kind: input, shape index: {}]
  %s4 = inlined_call_operand.vmem [shape: f32[128,128], index: 4, kind: output, shape index: {}]
  %s5 = sld [smem:[#allocation0]]
  $region65: #{cnn_block_forward.1} parent=0
    _
  %s7 = ssub.s32 1, %s5
  %s8 = scalar_select 0, %s7, %s5
  loop: start=0, step=1, limit=4
  $region2: #{cnn_block_forward.1} parent=0 // loop_pre_header
    _
  $region3: #{cnn_block_forward.1} parent=0 // loop_header
    %s10 = sphi 0, %s14
    %p11 = scmp.ge.s32.totalorder %s10, 4
    %s17 = sphi 0, %s29
    %s18 = sphi 0, %s25
    %s19 = sphi 0, %s17
    %s20 = sphi 0, %s18
    %s21 = sphi 0, %s19
    %s22 = sphi 0, %s20
    %s36 = sphi 0, %s38
    %s39 = sphi 0, %s36
    %s40 = sphi 0, %s39
    %s56 = sphi 0, %s40
    %s60 = sphi 0, %s60
    %s62 = sphi 0, %s60
    %s63 = sphi 0, %s62
    %s77 = sphi 0, %s63
    %s81 = sphi 0, %s81
    %s83 = sphi 0, %s81
    %s84 = sphi 0, %s83
    %s98 = sphi 0, %s84
    %s102 = sphi 0, %s102
    %s104 = sphi 0, %s102
    %s105 = sphi 0, %s104
    %s119 = sphi 0, %s105
    %s127 = sphi 0, %s129
    %s130 = sphi 0, %s127
    %s131 = sphi 0, %s130
    %s147 = sphi 0, %s131
  $region4: #{cnn_block_forward.1} parent=0 // loop_header_branch
    %13 = sbr.rel (%p11) target = $region8
  $region5: #{cnn_block_forward.1} parent=0 // loop_body
    %s15 = ssub.s32 %s10, 1
    %s16 = ssub.s32 %s10, 2
    %s23 = sadd.s32 1, %s18
    %p24 = scmp.ge.s32.totalorder %s23, 1
    %s25 = scalar_select %p24, 0, %s23
    %s26 = sadd.s32 1, %s17
    %s27 = scalar_select %p24, %s26, %s17
    %p28 = scmp.ge.s32.totalorder %s27, 2
    %s29 = scalar_select %p28, 0, %s27
    %s30 = ssub.s32 1, %s17
    %s31 = smul.u32 %s18, %s30
    %s32 = ssub.s32 1, %s29
    %s33 = smul.u32 %s25, %s32
    %s34 = ssub.s32 %s31, %s33
    %p35 = scmp.eq.s32.totalorder %s34, 0
    %s37 = sadd.s32 %s36, 1
    %s38 = scalar_select %p35, %s36, %s37
    %p41 = pneg %p35
    %p42 = scmp.eq.s32.totalorder %s10, 1
    %p43 = por %p41, %p42
    %p44 = scmp.ne.s32.totalorder %s36, %s39
    %p45 = scmp.eq.s32.totalorder %s10, 0
    %p46 = por %p44, %p45
    %p47 = scmp.ne.s32.totalorder %s36, %s39
    %p48 = scmp.eq.s32.totalorder %s15, 1
    %p49 = por %p47, %p48
    %p50 = scmp.ne.s32.totalorder %s39, %s40
    %p51 = scmp.eq.s32.totalorder %s15, 0
    %p52 = por %p50, %p51
    %p53 = scmp.ne.s32.totalorder %s39, %s40
    %p54 = scmp.eq.s32.totalorder %s16, 1
    %p55 = por %p53, %p54
    %p57 = scmp.ne.s32.totalorder %s40, %s56
    %p58 = scmp.eq.s32.totalorder %s16, 0
    %p59 = por %p57, %p58
    %s61 = sadd.s32 %s60, 1
    %p64 = scmp.eq.s32.totalorder %s10, 1
    %p65 = scmp.ne.s32.totalorder %s60, %s62
    %p66 = scmp.eq.s32.totalorder %s10, 0
    %p67 = por %p65, %p66
    %p68 = scmp.ne.s32.totalorder %s60, %s62
    %p69 = scmp.eq.s32.totalorder %s15, 1
    %p70 = por %p68, %p69
    %p71 = scmp.ne.s32.totalorder %s62, %s63
    %p72 = scmp.eq.s32.totalorder %s15, 0
    %p73 = por %p71, %p72
    %p74 = scmp.ne.s32.totalorder %s62, %s63
    %p75 = scmp.eq.s32.totalorder %s16, 1
    %p76 = por %p74, %p75
    %p78 = scmp.ne.s32.totalorder %s63, %s77
    %p79 = scmp.eq.s32.totalorder %s16, 0
    %p80 = por %p78, %p79
    %s82 = sadd.s32 %s81, 1
    %p85 = scmp.eq.s32.totalorder %s10, 1
    %p86 = scmp.ne.s32.totalorder %s81, %s83
    %p87 = scmp.eq.s32.totalorder %s10, 0
    %p88 = por %p86, %p87
    %p89 = scmp.ne.s32.totalorder %s81, %s83
    %p90 = scmp.eq.s32.totalorder %s15, 1
    %p91 = por %p89, %p90
    %p92 = scmp.ne.s32.totalorder %s83, %s84
    %p93 = scmp.eq.s32.totalorder %s15, 0
    %p94 = por %p92, %p93
    %p95 = scmp.ne.s32.totalorder %s83, %s84
    %p96 = scmp.eq.s32.totalorder %s16, 1
    %p97 = por %p95, %p96
    %p99 = scmp.ne.s32.totalorder %s84, %s98
    %p100 = scmp.eq.s32.totalorder %s16, 0
    %p101 = por %p99, %p100
    %s103 = sadd.s32 %s102, 1
    %p106 = scmp.eq.s32.totalorder %s10, 1
    %p107 = scmp.ne.s32.totalorder %s102, %s104
    %p108 = scmp.eq.s32.totalorder %s10, 0
    %p109 = por %p107, %p108
    %p110 = scmp.ne.s32.totalorder %s102, %s104
    %p111 = scmp.eq.s32.totalorder %s15, 1
    %p112 = por %p110, %p111
    %p113 = scmp.ne.s32.totalorder %s104, %s105
    %p114 = scmp.eq.s32.totalorder %s15, 0
    %p115 = por %p113, %p114
    %p116 = scmp.ne.s32.totalorder %s104, %s105
    %p117 = scmp.eq.s32.totalorder %s16, 1
    %p118 = por %p116, %p117
    %p120 = scmp.ne.s32.totalorder %s105, %s119
    %p121 = scmp.eq.s32.totalorder %s16, 0
    %p122 = por %p120, %p121
    %s123 = smul.u32 %s18, %s17
    %s124 = smul.u32 %s25, %s29
    %s125 = ssub.s32 %s123, %s124
    %p126 = scmp.eq.s32.totalorder %s125, 0
    %s128 = sadd.s32 %s127, 1
    %s129 = scalar_select %p126, %s127, %s128
    %p132 = pneg %p126
    %p133 = scmp.eq.s32.totalorder %s10, 1
    %p134 = por %p132, %p133
    %p135 = scmp.ne.s32.totalorder %s127, %s130
    %p136 = scmp.eq.s32.totalorder %s10, 0
    %p137 = por %p135, %p136
    %p138 = scmp.ne.s32.totalorder %s127, %s130
    %p139 = scmp.eq.s32.totalorder %s15, 1
    %p140 = por %p138, %p139
    %p141 = scmp.ne.s32.totalorder %s130, %s131
    %p142 = scmp.eq.s32.totalorder %s15, 0
    %p143 = por %p141, %p142
    %p144 = scmp.ne.s32.totalorder %s130, %s131
    %p145 = scmp.eq.s32.totalorder %s16, 1
    %p146 = por %p144, %p145
    %p148 = scmp.ne.s32.totalorder %s131, %s147
    %p149 = scmp.eq.s32.totalorder %s16, 0
    %p150 = por %p148, %p149
    %p151 = scmp.le.s32.totalorder 1, %s10
    %p152 = scmp.lt.s32.totalorder %s10, 3
    %p153 = pnand %p151, %p152
    %p154 = pneg %p153
    // Predicated region
    $region9: #{cnn_block_forward.1} parent=5 // pred_check
      _
    $region10: #{cnn_block_forward.1} parent=5 // pred_check_branch
      %156 = sbr.rel (%p153) target = $region12
    $region11: #{cnn_block_forward.1} parent=5 // pred_region
      %s157 = ssub.s32 %s10, 1
      // Predicated region
      $region13: #{cnn_block_forward.1} parent=11 // pred_check
        %p158 = pneg %p73
      $region14: #{cnn_block_forward.1} parent=11 // pred_check_branch
        %160 = sbr.rel (%p158) target = $region16
      $region15: #{cnn_block_forward.1} parent=11 // pred_region
        _
      $region16: #{cnn_block_forward.1} parent=11 // pred_fallthru
        _
      // Predicated region
      $region17: #{cnn_block_forward.1} parent=11 // pred_check
        %p161 = pneg %p94
      $region18: #{cnn_block_forward.1} parent=11 // pred_check_branch
        %163 = sbr.rel (%p161) target = $region20
      $region19: #{cnn_block_forward.1} parent=11 // pred_region
        _
      $region20: #{cnn_block_forward.1} parent=11 // pred_fallthru
        _
      // Predicated region
      $region21: #{cnn_block_forward.1} parent=11 // pred_check
        %p164 = pneg %p115
      $region22: #{cnn_block_forward.1} parent=11 // pred_check_branch
        %166 = sbr.rel (%p164) target = $region24
      $region23: #{cnn_block_forward.1} parent=11 // pred_region
        _
      $region24: #{cnn_block_forward.1} parent=11 // pred_fallthru
        _
    $region12: #{cnn_block_forward.1} parent=5 // pred_fallthru
      _
    %p167 = scmp.lt.s32.totalorder %s10, 2
    // Predicated region
    $region25: #{cnn_block_forward.1} parent=5 // pred_check
      %p168 = pneg %p167
    $region26: #{cnn_block_forward.1} parent=5 // pred_check_branch
      %170 = sbr.rel (%p168) target = $region28
    $region27: #{cnn_block_forward.1} parent=5 // pred_region
      // Predicated region
      $region29: #{cnn_block_forward.1} parent=27 // pred_check
        %p171 = pneg %p46
      $region30: #{cnn_block_forward.1} parent=27 // pred_check_branch
        %173 = sbr.rel (%p171) target = $region32
      $region31: #{cnn_block_forward.1} parent=27 // pred_region
        %s174 = ssub.s32 1, %s17
        %s175 = smul.u32 %s18, %s174
        %s176 = smul.u32 16, %s175
        %p177 = scmp.lt.s32.totalorder %s176, 15
        %s178 = scalar_select %p177, %s176, 15
        %s179 = smul.addr %s178, 8
        %s180 = scalar_lea.vmem %s0, %s179
        %s181 = ssub.s32 1, %s17
        %s182 = smul.u32 %s18, %s181
        %s183 = smul.u32 16, %s182
      $region32: #{cnn_block_forward.1} parent=27 // pred_fallthru
        _
    $region28: #{cnn_block_forward.1} parent=5 // pred_fallthru
      _
    %p184 = scmp.le.s32.totalorder 1, %s10
    %p185 = scmp.lt.s32.totalorder %s10, 3
    %p186 = pnand %p184, %p185
    %p187 = pneg %p186
    // Predicated region
    $region33: #{cnn_block_forward.1} parent=5 // pred_check
      _
    $region34: #{cnn_block_forward.1} parent=5 // pred_check_branch
      %189 = sbr.rel (%p186) target = $region36
    $region35: #{cnn_block_forward.1} parent=5 // pred_region
      %s190 = ssub.s32 %s10, 1
      %s191 = ssub.s32 1, %s19
      %s192 = smul.u32 %s20, %s191
      %s193 = smul.u32 16, %s192
      %p194 = scmp.lt.s32.totalorder %s193, 15
      %s195 = scalar_select %p194, %s193, 15
      %s196 = smul.addr %s195, 8
      %s197 = scalar_lea.vmem %s0, %s196
      %p198 = pneg %p52
      %p199 = pneg %p49
      %p200 = pneg %p73
      %p201 = pneg %p70
      %p202 = pneg %p94
      %p203 = pneg %p91
      %p204 = pneg %p115
      %p205 = pneg %p112
      %p206 = pneg %p143
      %p207 = pneg %p140
      %s208 = smul.u32 %s20, %s19
      %s209 = smul.u32 16, %s208
      %p210 = scmp.lt.s32.totalorder %s209, 15
      %s211 = scalar_select %p210, %s209, 15
      %s212 = smul.addr %s211, 8
      %s213 = scalar_lea.vmem %s4, %s212
      %s214 = ssub.s32 1, %s19
      %s215 = smul.u32 %s20, %s214
      %s216 = smul.u32 16, %s215
      %p217 = scmp.lt.s32.totalorder %s216, 15
      %s218 = scalar_select %p217, %s216, 15
      %s219 = smul.addr %s218, 8
      %s220 = scalar_lea.vmem %s0, %s219
      %s221 = ssub.s32 1, %s19
      %s222 = smul.u32 %s20, %s221
      %s223 = smul.u32 16, %s222
      %s224 = smul.u32 %s20, %s19
      %s225 = smul.u32 16, %s224
      %p226 = scmp.lt.s32.totalorder %s225, 15
      %s227 = scalar_select %p226, %s225, 15
      %s228 = smul.addr %s227, 8
      %s229 = scalar_lea.vmem %s4, %s228
      %s230 = smul.u32 %s20, %s19
      %s231 = smul.u32 16, %s230
      %p232 = scmp.eq.s32.totalorder %s19, 0
      // Predicated region
      $region37: #{cnn_block_forward.1} parent=35 // pred_check
        %p233 = pneg %p232
      $region38: #{cnn_block_forward.1} parent=35 // pred_check_branch
        %235 = sbr.rel (%p233) target = $region40
      $region39: #{cnn_block_forward.1} parent=35 // pred_region
        %p236 = scmp.eq.s32.totalorder %s20, 0
        // Predicated region
        $region41: #{cnn_block_forward.1} parent=39 // pred_check
          %p237 = pneg %p236
        $region42: #{cnn_block_forward.1} parent=39 // pred_check_branch
          %239 = sbr.rel (%p237) target = $region44
        $region43: #{cnn_block_forward.1} parent=39 // pred_region
          %240 = vst [vmem:[#allocation3] sm:$0xff] 0.0
        $region44: #{cnn_block_forward.1} parent=39 // pred_fallthru
          _
        %v241 = vld [vmem:[%s220] sm:$0xff]
        %v242 = vld [vmem:[%s220 + $0x8] sm:$0xff]
        %v243 = vld [vmem:[%s220 + $0x10] sm:$0xff]
        %v244 = vld [vmem:[%s220 + $0x18] sm:$0xff]
        %v245 = vld [vmem:[%s220 + $0x20] sm:$0xff]
        %v246 = vld [vmem:[%s220 + $0x28] sm:$0xff]
        %v247 = vld [vmem:[%s220 + $0x30] sm:$0xff]
        %v248 = vld [vmem:[%s220 + $0x38] sm:$0xff]
        %v249 = vld [vmem:[%s220 + $0x40] sm:$0xff]
        %v250 = vld [vmem:[%s220 + $0x48] sm:$0xff]
        %v251 = vld [vmem:[%s220 + $0x50] sm:$0xff]
        %v252 = vld [vmem:[%s220 + $0x58] sm:$0xff]
        %v253 = vld [vmem:[%s220 + $0x60] sm:$0xff]
        %v254 = vld [vmem:[%s220 + $0x68] sm:$0xff]
        %v255 = vld [vmem:[%s220 + $0x70] sm:$0xff]
        %v256 = vld [vmem:[%s220 + $0x78] sm:$0xff]
        %v257 = vld [vmem:[%s1] sm:$0xff]
        %v258 = vld [vmem:[%s1 + $0x8] sm:$0xff]
        %v259 = vld [vmem:[%s1 + $0x10] sm:$0xff]
        %v260 = vld [vmem:[%s1 + $0x18] sm:$0xff]
        %v261 = vld [vmem:[%s1 + $0x20] sm:$0xff]
        %v262 = vld [vmem:[%s1 + $0x28] sm:$0xff]
        %v263 = vld [vmem:[%s1 + $0x30] sm:$0xff]
        %v264 = vld [vmem:[%s1 + $0x38] sm:$0xff]
        %v265 = vld [vmem:[%s1 + $0x40] sm:$0xff]
        %v266 = vld [vmem:[%s1 + $0x48] sm:$0xff]
        %v267 = vld [vmem:[%s1 + $0x50] sm:$0xff]
        %v268 = vld [vmem:[%s1 + $0x58] sm:$0xff]
        %v269 = vld [vmem:[%s1 + $0x60] sm:$0xff]
        %v270 = vld [vmem:[%s1 + $0x68] sm:$0xff]
        %v271 = vld [vmem:[%s1 + $0x70] sm:$0xff]
        %v272 = vld [vmem:[%s1 + $0x78] sm:$0xff]
        %273 = vmatprep.subr.mxu0 0.0
        %274 = vmatpush1.msra.mxu0 %v257
        %275 = vmatprep.subr.mxu0 0.0
        %276 = vmatpush1.msra.mxu0 %v258
        %277 = vmatprep.subr.mxu0 0.0
        %278 = vmatpush1.msra.mxu0 %v259
        %279 = vmatprep.subr.mxu0 0.0
        %280 = vmatpush1.msra.mxu0 %v260
        %281 = vmatprep.subr.mxu0 0.0
        %282 = vmatpush1.msra.mxu0 %v261
        %283 = vmatprep.subr.mxu0 0.0
        %284 = vmatpush1.msra.mxu0 %v262
        %285 = vmatprep.subr.mxu0 0.0
        %286 = vmatpush1.msra.mxu0 %v263
        %287 = vmatprep.subr.mxu0 0.0
        %288 = vmatpush1.msra.mxu0 %v264
        %289 = vmatprep.subr.mxu0 0.0
        %290 = vmatpush1.msra.mxu0 %v265
        %291 = vmatprep.subr.mxu0 0.0
        %292 = vmatpush1.msra.mxu0 %v266
        %293 = vmatprep.subr.mxu0 0.0
        %294 = vmatpush1.msra.mxu0 %v267
        %295 = vmatprep.subr.mxu0 0.0
        %296 = vmatpush1.msra.mxu0 %v268
        %297 = vmatprep.subr.mxu0 0.0
        %298 = vmatpush1.msra.mxu0 %v269
        %299 = vmatprep.subr.mxu0 0.0
        %300 = vmatpush1.msra.mxu0 %v270
        %301 = vmatprep.subr.mxu0 0.0
        %302 = vmatpush1.msra.mxu0 %v271
        %303 = vmatprep.subr.mxu0 0.0
        %304 = vmatpush1.msra.mxu0 %v272
        %305 = vmatprep.subr.mxu0 0.0
        %306 = vmatpush1.msra.mxu0 0.0
        %307 = vmatprep.subr.mxu0 0.0
        %308 = vmatpush1.msra.mxu0 0.0
        %309 = vmatprep.subr.mxu0 0.0
        %310 = vmatpush1.msra.mxu0 0.0
        %311 = vmatprep.subr.mxu0 0.0
        %312 = vmatpush1.msra.mxu0 0.0
        %313 = vmatprep.subr.mxu0 0.0
        %314 = vmatpush1.msra.mxu0 0.0
        %315 = vmatprep.subr.mxu0 0.0
        %316 = vmatpush1.msra.mxu0 0.0
        %317 = vmatprep.subr.mxu0 0.0
        %318 = vmatpush1.msra.mxu0 0.0
        %319 = vmatprep.subr.mxu0 0.0
        %320 = vmatpush1.msra.mxu0 0.0
        %321 = vmatprep.subr.mxu0 0.0
        %322 = vmatpush1.msra.mxu0 0.0
        %323 = vmatprep.subr.mxu0 0.0
        %324 = vmatpush1.msra.mxu0 0.0
        %325 = vmatprep.subr.mxu0 0.0
        %326 = vmatpush1.msra.mxu0 0.0
        %327 = vmatprep.subr.mxu0 0.0
        %328 = vmatpush1.msra.mxu0 0.0
        %329 = vmatprep.subr.mxu0 0.0
        %330 = vmatpush1.msra.mxu0 0.0
        %331 = vmatprep.subr.mxu0 0.0
        %332 = vmatpush1.msra.mxu0 0.0
        %333 = vmatprep.subr.mxu0 0.0
        %334 = vmatpush1.msra.mxu0 0.0
        %335 = vmatprep.subr.mxu0 0.0
        %336 = vmatpush1.msra.mxu0 0.0
        %337 = vmatprep.mubr.f32.mxu0 0.0
        %338 = vmatmul.mubr.f32.gmra.mrb[0].mxu0 %v241
        %v339 = vpop.f32.mrb[0].mxu0
        %v340 = vadd.f32 0.0, %v339
        %v341 = vpop.f32.mrb[0].mxu0
        %342 = vmatprep.mubr.f32.mxu0 0.0
        %343 = vmatmul.mubr.f32.gmra.mrb[0].mxu0 %v242
        %v344 = vpop.f32.mrb[0].mxu0
        %v345 = vadd.f32 0.0, %v344
        %v346 = vpop.f32.mrb[0].mxu0
        %347 = vmatprep.mubr.f32.mxu0 0.0
        %348 = vmatmul.mubr.f32.gmra.mrb[0].mxu0 %v243
        %v349 = vpop.f32.mrb[0].mxu0
        %v350 = vadd.f32 0.0, %v349
        %v351 = vpop.f32.mrb[0].mxu0
        %352 = vmatprep.mubr.f32.mxu0 0.0
        %353 = vmatmul.mubr.f32.gmra.mrb[0].mxu0 %v244
        %v354 = vpop.f32.mrb[0].mxu0
        %v355 = vadd.f32 0.0, %v354
        %v356 = vpop.f32.mrb[0].mxu0
        %357 = vmatprep.mubr.f32.mxu0 0.0
        %358 = vmatmul.mubr.f32.gmra.mrb[0].mxu0 %v245
        %v359 = vpop.f32.mrb[0].mxu0
        %v360 = vadd.f32 0.0, %v359
        %v361 = vpop.f32.mrb[0].mxu0
        %362 = vmatprep.mubr.f32.mxu0 0.0
        %363 = vmatmul.mubr.f32.gmra.mrb[0].mxu0 %v246
        %v364 = vpop.f32.mrb[0].mxu0
        %v365 = vadd.f32 0.0, %v364
        %v366 = vpop.f32.mrb[0].mxu0
        %367 = vmatprep.mubr.f32.mxu0 0.0
        %368 = vmatmul.mubr.f32.gmra.mrb[0].mxu0 %v247
        %v369 = vpop.f32.mrb[0].mxu0
        %v370 = vadd.f32 0.0, %v369
        %v371 = vpop.f32.mrb[0].mxu0
        %372 = vmatprep.mubr.f32.mxu0 0.0
        %373 = vmatmul.mubr.f32.gmra.mrb[0].mxu0 %v248
        %v374 = vpop.f32.mrb[0].mxu0
        %v375 = vadd.f32 0.0, %v374
        %v376 = vpop.f32.mrb[0].mxu0
        %377 = vmatprep.mubr.f32.mxu0 0.0
        %378 = vmatmul.mubr.f32.gmra.mrb[0].mxu0 %v249
        %v379 = vpop.f32.mrb[0].mxu0
        %v380 = vadd.f32 0.0, %v379
        %v381 = vpop.f32.mrb[0].mxu0
        %382 = vmatprep.mubr.f32.mxu0 0.0
        %383 = vmatmul.mubr.f32.gmra.mrb[0].mxu0 %v250
        %v384 = vpop.f32.mrb[0].mxu0
        %v385 = vadd.f32 0.0, %v384
        %v386 = vpop.f32.mrb[0].mxu0
        %387 = vmatprep.mubr.f32.mxu0 0.0
        %388 = vmatmul.mubr.f32.gmra.mrb[0].mxu0 %v251
        %v389 = vpop.f32.mrb[0].mxu0
        %v390 = vadd.f32 0.0, %v389
        %v391 = vpop.f32.mrb[0].mxu0
        %392 = vmatprep.mubr.f32.mxu0 0.0
        %393 = vmatmul.mubr.f32.gmra.mrb[0].mxu0 %v252
        %v394 = vpop.f32.mrb[0].mxu0
        %v395 = vadd.f32 0.0, %v394
        %v396 = vpop.f32.mrb[0].mxu0
        %397 = vmatprep.mubr.f32.mxu0 0.0
        %398 = vmatmul.mubr.f32.gmra.mrb[0].mxu0 %v253
        %v399 = vpop.f32.mrb[0].mxu0
        %v400 = vadd.f32 0.0, %v399
        %v401 = vpop.f32.mrb[0].mxu0
        %402 = vmatprep.mubr.f32.mxu0 0.0
        %403 = vmatmul.mubr.f32.gmra.mrb[0].mxu0 %v254
        %v404 = vpop.f32.mrb[0].mxu0
        %v405 = vadd.f32 0.0, %v404
        %v406 = vpop.f32.mrb[0].mxu0
        %407 = vmatprep.mubr.f32.mxu0 0.0
        %408 = vmatmul.mubr.f32.gmra.mrb[0].mxu0 %v255
        %v409 = vpop.f32.mrb[0].mxu0
        %v410 = vadd.f32 0.0, %v409
        %v411 = vpop.f32.mrb[0].mxu0
        %412 = vmatprep.mubr.f32.mxu0 0.0
        %413 = vmatmul.mubr.f32.gmra.mrb[0].mxu0 %v256
        %v414 = vpop.f32.mrb[0].mxu0
        %v415 = vadd.f32 0.0, %v414
        %v416 = vpop.f32.mrb[0].mxu0
        %417 = vdwg.mxu0
        %s418 = smul.u32 %s20, 128
        %s419 = scalar_lea.vmem [#allocation2], %s418
        %420 = vst [vmem:[%s419] sm:$0xff] %v340
        %421 = vst [vmem:[%s419 + $0x8] sm:$0xff] %v345
        %422 = vst [vmem:[%s419 + $0x10] sm:$0xff] %v350
        %423 = vst [vmem:[%s419 + $0x18] sm:$0xff] %v355
        %424 = vst [vmem:[%s419 + $0x20] sm:$0xff] %v360
        %425 = vst [vmem:[%s419 + $0x28] sm:$0xff] %v365
        %426 = vst [vmem:[%s419 + $0x30] sm:$0xff] %v370
        %427 = vst [vmem:[%s419 + $0x38] sm:$0xff] %v375
        %428 = vst [vmem:[%s419 + $0x40] sm:$0xff] %v380
        %429 = vst [vmem:[%s419 + $0x48] sm:$0xff] %v385
        %430 = vst [vmem:[%s419 + $0x50] sm:$0xff] %v390
        %431 = vst [vmem:[%s419 + $0x58] sm:$0xff] %v395
        %432 = vst [vmem:[%s419 + $0x60] sm:$0xff] %v400
        %433 = vst [vmem:[%s419 + $0x68] sm:$0xff] %v405
        %434 = vst [vmem:[%s419 + $0x70] sm:$0xff] %v410
        %435 = vst [vmem:[%s419 + $0x78] sm:$0xff] %v415
        %v436 = vld [vmem:[#allocation3] sm:$0x1]
        %v437 = vadd.f32 %v340, %v345
        %v438 = vadd.f32 %v437, %v350
        %v439 = vadd.f32 %v438, %v355
        %v440 = vadd.f32 %v439, %v360
        %v441 = vadd.f32 %v440, %v365
        %v442 = vadd.f32 %v441, %v370
        %v443 = vadd.f32 %v442, %v375
        %v444 = vadd.f32 %v443, %v380
        %v445 = vadd.f32 %v444, %v385
        %v446 = vadd.f32 %v445, %v390
        %v447 = vadd.f32 %v446, %v395
        %v448 = vadd.f32 %v447, %v400
        %v449 = vadd.f32 %v448, %v405
        %v450 = vadd.f32 %v449, %v410
        %v451 = vadd.f32 %v450, %v415
        %v452 = vrot.slane %v451, 4
        %v453 = vadd.f32 %v451, %v452
        %v454 = vrot.slane %v453, 2
        %v455 = vadd.f32 %v453, %v454
        %v456 = vrot.slane %v455, 1
        %v457 = vadd.f32 %v455, %v456
        %v458 = vadd.f32 %v436, %v457
        %459 = vst [vmem:[#allocation3] sm:$0x1] %v458
        %v460 = vld [vmem:[#allocation3 + $0x1] sm:$0x1]
        %v461 = vmul.f32 %v340, %v340
        %v462 = vmul.f32 %v345, %v345
        %v463 = vmul.f32 %v350, %v350
        %v464 = vmul.f32 %v355, %v355
        %v465 = vmul.f32 %v360, %v360
        %v466 = vmul.f32 %v365, %v365
        %v467 = vmul.f32 %v370, %v370
        %v468 = vmul.f32 %v375, %v375
        %v469 = vmul.f32 %v380, %v380
        %v470 = vmul.f32 %v385, %v385
        %v471 = vmul.f32 %v390, %v390
        %v472 = vmul.f32 %v395, %v395
        %v473 = vmul.f32 %v400, %v400
        %v474 = vmul.f32 %v405, %v405
        %v475 = vmul.f32 %v410, %v410
        %v476 = vmul.f32 %v415, %v415
        %v477 = vadd.f32 %v461, %v462
        %v478 = vadd.f32 %v477, %v463
        %v479 = vadd.f32 %v478, %v464
        %v480 = vadd.f32 %v479, %v465
        %v481 = vadd.f32 %v480, %v466
        %v482 = vadd.f32 %v481, %v467
        %v483 = vadd.f32 %v482, %v468
        %v484 = vadd.f32 %v483, %v469
        %v485 = vadd.f32 %v484, %v470
        %v486 = vadd.f32 %v485, %v471
        %v487 = vadd.f32 %v486, %v472
        %v488 = vadd.f32 %v487, %v473
        %v489 = vadd.f32 %v488, %v474
        %v490 = vadd.f32 %v489, %v475
        %v491 = vadd.f32 %v490, %v476
        %v492 = vrot.slane %v491, 4
        %v493 = vadd.f32 %v491, %v492
        %v494 = vrot.slane %v493, 2
        %v495 = vadd.f32 %v493, %v494
        %v496 = vrot.slane %v495, 1
        %v497 = vadd.f32 %v495, %v496
        %v498 = vadd.f32 %v460, %v497
        %499 = vst [vmem:[#allocation3 + $0x1] sm:$0x1] %v498
      $region40: #{cnn_block_forward.1} parent=35 // pred_fallthru
        _
      %p500 = scmp.eq.s32.totalorder %s19, 1
      // Predicated region
      $region45: #{cnn_block_forward.1} parent=35 // pred_check
        %p501 = pneg %p500
      $region46: #{cnn_block_forward.1} parent=35 // pred_check_branch
        %503 = sbr.rel (%p501) target = $region48
      $region47: #{cnn_block_forward.1} parent=35 // pred_region
        %p504 = scmp.eq.s32.totalorder %s20, 0
        // Predicated region
        $region49: #{cnn_block_forward.1} parent=47 // pred_check
          %p505 = pneg %p504
        $region50: #{cnn_block_forward.1} parent=47 // pred_check_branch
          %507 = sbr.rel (%p505) target = $region52
        $region51: #{cnn_block_forward.1} parent=47 // pred_region
          %v508 = vld [vmem:[#allocation3] sm:$0xff]
          %v509 = vld [vmem:[%s3] sm:$0xff]
          %v510 = vld [vmem:[%s3 + $0x8] sm:$0xff]
          %v511 = vld [vmem:[%s3 + $0x10] sm:$0xff]
          %v512 = vld [vmem:[%s3 + $0x18] sm:$0xff]
          %v513 = vld [vmem:[%s3 + $0x20] sm:$0xff]
          %v514 = vld [vmem:[%s3 + $0x28] sm:$0xff]
          %v515 = vld [vmem:[%s3 + $0x30] sm:$0xff]
          %v516 = vld [vmem:[%s3 + $0x38] sm:$0xff]
          %v517 = vld [vmem:[%s3 + $0x40] sm:$0xff]
          %v518 = vld [vmem:[%s3 + $0x48] sm:$0xff]
          %v519 = vld [vmem:[%s3 + $0x50] sm:$0xff]
          %v520 = vld [vmem:[%s3 + $0x58] sm:$0xff]
          %v521 = vld [vmem:[%s3 + $0x60] sm:$0xff]
          %v522 = vld [vmem:[%s3 + $0x68] sm:$0xff]
          %v523 = vld [vmem:[%s3 + $0x70] sm:$0xff]
          %v524 = vld [vmem:[%s3 + $0x78] sm:$0xff]
          %525 = vmatprep.subr.mxu0 0.0
          %526 = vmatpush1.msra.mxu0 %v509
          %527 = vmatprep.subr.mxu0 0.0
          %528 = vmatpush1.msra.mxu0 %v510
          %529 = vmatprep.subr.mxu0 0.0
          %530 = vmatpush1.msra.mxu0 %v511
          %531 = vmatprep.subr.mxu0 0.0
          %532 = vmatpush1.msra.mxu0 %v512
          %533 = vmatprep.subr.mxu0 0.0
          %534 = vmatpush1.msra.mxu0 %v513
          %535 = vmatprep.subr.mxu0 0.0
          %536 = vmatpush1.msra.mxu0 %v514
          %537 = vmatprep.subr.mxu0 0.0
          %538 = vmatpush1.msra.mxu0 %v515
          %539 = vmatprep.subr.mxu0 0.0
          %540 = vmatpush1.msra.mxu0 %v516
          %541 = vmatprep.subr.mxu0 0.0
          %542 = vmatpush1.msra.mxu0 %v517
          %543 = vmatprep.subr.mxu0 0.0
          %544 = vmatpush1.msra.mxu0 %v518
          %545 = vmatprep.subr.mxu0 0.0
          %546 = vmatpush1.msra.mxu0 %v519
          %547 = vmatprep.subr.mxu0 0.0
          %548 = vmatpush1.msra.mxu0 %v520
          %549 = vmatprep.subr.mxu0 0.0
          %550 = vmatpush1.msra.mxu0 %v521
          %551 = vmatprep.subr.mxu0 0.0
          %552 = vmatpush1.msra.mxu0 %v522
          %553 = vmatprep.subr.mxu0 0.0
          %554 = vmatpush1.msra.mxu0 %v523
          %555 = vmatprep.subr.mxu0 0.0
          %556 = vmatpush1.msra.mxu0 %v524
          %557 = vmatprep.subr.mxu0 0.0
          %558 = vmatpush1.msra.mxu0 0.0
          %559 = vmatprep.subr.mxu0 0.0
          %560 = vmatpush1.msra.mxu0 0.0
          %561 = vmatprep.subr.mxu0 0.0
          %562 = vmatpush1.msra.mxu0 0.0
          %563 = vmatprep.subr.mxu0 0.0
          %564 = vmatpush1.msra.mxu0 0.0
          %565 = vmatprep.subr.mxu0 0.0
          %566 = vmatpush1.msra.mxu0 0.0
          %567 = vmatprep.subr.mxu0 0.0
          %568 = vmatpush1.msra.mxu0 0.0
          %569 = vmatprep.subr.mxu0 0.0
          %570 = vmatpush1.msra.mxu0 0.0
          %571 = vmatprep.subr.mxu0 0.0
          %572 = vmatpush1.msra.mxu0 0.0
          %573 = vmatprep.subr.mxu0 0.0
          %574 = vmatpush1.msra.mxu0 0.0
          %575 = vmatprep.subr.mxu0 0.0
          %576 = vmatpush1.msra.mxu0 0.0
          %577 = vmatprep.subr.mxu0 0.0
          %578 = vmatpush1.msra.mxu0 0.0
          %579 = vmatprep.subr.mxu0 0.0
          %580 = vmatpush1.msra.mxu0 0.0
          %581 = vmatprep.subr.mxu0 0.0
          %582 = vmatpush1.msra.mxu0 0.0
          %583 = vmatprep.subr.mxu0 0.0
          %584 = vmatpush1.msra.mxu0 0.0
          %585 = vmatprep.subr.mxu0 0.0
          %586 = vmatpush1.msra.mxu0 0.0
          %587 = vmatprep.subr.mxu0 0.0
          %588 = vmatpush1.msra.mxu0 0.0
          %589 = vmatprep.mubr.f32.mxu0 0.0
          %590 = vmatmul.mubr.f32.gmra.mrb[0].mxu0 %v508
          %v591 = vpop.f32.mrb[0].mxu0
          %v592 = vadd.f32 0.0, %v591
          %v593 = vpop.f32.mrb[0].mxu0
          %594 = vdwg.mxu0
          %v595 = vmul.f32 %v592, 0.001953125
          %v596 = vmul.f32 %v595, %v595
          %v598 = vrot.slane %v596, 7
          %v600 = vsub.f32 %v595, %v598
          %v601 = vmax.f32 %v600, 0.0
          %v602 = vld [vmem:[%s2] sm:$0x1]
          %v603 = vadd.f32 %v601, 1e-05
          %v604 = vrsqrt.pop %v603
          %v606 = vrot.slane %v604, 1
          %v608 = vmul.f32 %v602, %v606
          %609 = vst [vmem:[#allocation4] sm:$0x1] %v608
          %v610 = vld [vmem:[%s2 + $0x1] sm:$0x1]
          %v611 = vmul.f32 %v595, %v608
          %v612 = vsub.f32 %v610, %v611
          %613 = vst [vmem:[#allocation4 + $0x1] sm:$0x1] %v612
        $region52: #{cnn_block_forward.1} parent=47 // pred_fallthru
          _
        %s614 = smul.u32 %s20, 128
        %s615 = scalar_lea.vmem [#allocation2], %s614
        %v616 = vld [vmem:[%s615] sm:$0xff]
        %v617 = vld [vmem:[%s615 + $0x8] sm:$0xff]
        %v618 = vld [vmem:[%s615 + $0x10] sm:$0xff]
        %v619 = vld [vmem:[%s615 + $0x18] sm:$0xff]
        %v620 = vld [vmem:[%s615 + $0x20] sm:$0xff]
        %v621 = vld [vmem:[%s615 + $0x28] sm:$0xff]
        %v622 = vld [vmem:[%s615 + $0x30] sm:$0xff]
        %v623 = vld [vmem:[%s615 + $0x38] sm:$0xff]
        %v624 = vld [vmem:[%s615 + $0x40] sm:$0xff]
        %v625 = vld [vmem:[%s615 + $0x48] sm:$0xff]
        %v626 = vld [vmem:[%s615 + $0x50] sm:$0xff]
        %v627 = vld [vmem:[%s615 + $0x58] sm:$0xff]
        %v628 = vld [vmem:[%s615 + $0x60] sm:$0xff]
        %v629 = vld [vmem:[%s615 + $0x68] sm:$0xff]
        %v630 = vld [vmem:[%s615 + $0x70] sm:$0xff]
        %v631 = vld [vmem:[%s615 + $0x78] sm:$0xff]
        %v632 = vld [vmem:[#allocation4] sm:$0x1]
        %v633 = vlaneseq
        %v634 = vshrl.u32 %v633, 7
        %v635 = vsub.s32 0, %v634
        %v636 = vrot.slane %v632, %v635
        %v637 = vmul.f32 %v616, %v636
        %v638 = vmul.f32 %v617, %v636
        %v639 = vmul.f32 %v618, %v636
        %v640 = vmul.f32 %v619, %v636
        %v641 = vmul.f32 %v620, %v636
        %v642 = vmul.f32 %v621, %v636
        %v643 = vmul.f32 %v622, %v636
        %v644 = vmul.f32 %v623, %v636
        %v645 = vmul.f32 %v624, %v636
        %v646 = vmul.f32 %v625, %v636
        %v647 = vmul.f32 %v626, %v636
        %v648 = vmul.f32 %v627, %v636
        %v649 = vmul.f32 %v628, %v636
        %v650 = vmul.f32 %v629, %v636
        %v651 = vmul.f32 %v630, %v636
        %v652 = vmul.f32 %v631, %v636
        %v653 = vld [vmem:[#allocation4 + $0x1] sm:$0x1]
        %v654 = vlaneseq
        %v655 = vshrl.u32 %v654, 7
        %v656 = vsub.s32 0, %v655
        %v657 = vrot.slane %v653, %v656
        %v658 = vadd.f32 %v637, %v657
        %v659 = vadd.f32 %v638, %v657
        %v660 = vadd.f32 %v639, %v657
        %v661 = vadd.f32 %v640, %v657
        %v662 = vadd.f32 %v641, %v657
        %v663 = vadd.f32 %v642, %v657
        %v664 = vadd.f32 %v643, %v657
        %v665 = vadd.f32 %v644, %v657
        %v666 = vadd.f32 %v645, %v657
        %v667 = vadd.f32 %v646, %v657
        %v668 = vadd.f32 %v647, %v657
        %v669 = vadd.f32 %v648, %v657
        %v670 = vadd.f32 %v649, %v657
        %v671 = vadd.f32 %v650, %v657
        %v672 = vadd.f32 %v651, %v657
        %v673 = vadd.f32 %v652, %v657
        %v674 = vmax.f32 %v658, 0.0
        %v675 = vmax.f32 %v659, 0.0
        %v676 = vmax.f32 %v660, 0.0
        %v677 = vmax.f32 %v661, 0.0
        %v678 = vmax.f32 %v662, 0.0
        %v679 = vmax.f32 %v663, 0.0
        %v680 = vmax.f32 %v664, 0.0
        %v681 = vmax.f32 %v665, 0.0
        %v682 = vmax.f32 %v666, 0.0
        %v683 = vmax.f32 %v667, 0.0
        %v684 = vmax.f32 %v668, 0.0
        %v685 = vmax.f32 %v669, 0.0
        %v686 = vmax.f32 %v670, 0.0
        %v687 = vmax.f32 %v671, 0.0
        %v688 = vmax.f32 %v672, 0.0
        %v689 = vmax.f32 %v673, 0.0
        %690 = vst [vmem:[%s229] sm:$0xff] %v674
        %691 = vst [vmem:[%s229 + $0x8] sm:$0xff] %v675
        %692 = vst [vmem:[%s229 + $0x10] sm:$0xff] %v676
        %693 = vst [vmem:[%s229 + $0x18] sm:$0xff] %v677
        %694 = vst [vmem:[%s229 + $0x20] sm:$0xff] %v678
        %695 = vst [vmem:[%s229 + $0x28] sm:$0xff] %v679
        %696 = vst [vmem:[%s229 + $0x30] sm:$0xff] %v680
        %697 = vst [vmem:[%s229 + $0x38] sm:$0xff] %v681
        %698 = vst [vmem:[%s229 + $0x40] sm:$0xff] %v682
        %699 = vst [vmem:[%s229 + $0x48] sm:$0xff] %v683
        %700 = vst [vmem:[%s229 + $0x50] sm:$0xff] %v684
        %701 = vst [vmem:[%s229 + $0x58] sm:$0xff] %v685
        %702 = vst [vmem:[%s229 + $0x60] sm:$0xff] %v686
        %703 = vst [vmem:[%s229 + $0x68] sm:$0xff] %v687
        %704 = vst [vmem:[%s229 + $0x70] sm:$0xff] %v688
        %705 = vst [vmem:[%s229 + $0x78] sm:$0xff] %v689
      $region48: #{cnn_block_forward.1} parent=35 // pred_fallthru
        _
      %s706 = smul.u32 %s20, %s19
      %s707 = smul.u32 16, %s706
      %p708 = scmp.lt.s32.totalorder %s707, 15
      %s709 = scalar_select %p708, %s707, 15
      %s710 = smul.addr %s709, 8
      %s711 = scalar_lea.vmem %s4, %s710
      // Predicated region
      $region53: #{cnn_block_forward.1} parent=35 // pred_check
        %p712 = pneg %p140
      $region54: #{cnn_block_forward.1} parent=35 // pred_check_branch
        %714 = sbr.rel (%p712) target = $region56
      $region55: #{cnn_block_forward.1} parent=35 // pred_region
        %s715 = smul.u32 %s20, %s19
        %s716 = smul.u32 16, %s715
      $region56: #{cnn_block_forward.1} parent=35 // pred_fallthru
        _
    $region36: #{cnn_block_forward.1} parent=5 // pred_fallthru
      _
    %p717 = scmp.le.s32.totalorder 2, %s10
    // Predicated region
    $region57: #{cnn_block_forward.1} parent=5 // pred_check
      %p718 = pneg %p717
    $region58: #{cnn_block_forward.1} parent=5 // pred_check_branch
      %720 = sbr.rel (%p718) target = $region60
    $region59: #{cnn_block_forward.1} parent=5 // pred_region
      %s721 = ssub.s32 %s10, 2
      // Predicated region
      $region61: #{cnn_block_forward.1} parent=59 // pred_check
        %p722 = pneg %p146
      $region62: #{cnn_block_forward.1} parent=59 // pred_check_branch
        %724 = sbr.rel (%p722) target = $region64
      $region63: #{cnn_block_forward.1} parent=59 // pred_region
        %s725 = smul.u32 %s22, %s21
        %s726 = smul.u32 16, %s725
        %p727 = scmp.lt.s32.totalorder %s726, 15
        %s728 = scalar_select %p727, %s726, 15
        %s729 = smul.addr %s728, 8
        %s730 = scalar_lea.vmem %s4, %s729
      $region64: #{cnn_block_forward.1} parent=59 // pred_fallthru
        _
    $region60: #{cnn_block_forward.1} parent=5 // pred_fallthru
      _
  $region6: #{cnn_block_forward.1} parent=0 // loop_footer
    %s14 = sadd.s32 1, %s10
  $region7: #{cnn_block_forward.1} parent=0 // loop_footer_branch
    %9 = sbr.rel target = $region3
  $region8: #{cnn_block_forward.1} parent=0 // loop_exit
    _

</llo_original>
